<compile_context>
chip_gen: v6e
topology: v6e:2x2x1
jax: 0.10.0
libtpu: 0.0.40
codegen_flags: <defaults>
</compile_context>

<pallas_src>
import jax
import jax.numpy as jnp
from jax.experimental import pallas as pl
from jax.experimental.pallas import tpu as pltpu


def sem_update_kernel(sem_ref, emb_ref,
                      wg_s_ref, wg_e_ref, bg_ref,
                      wh_e_ref, wh_s_ref, bh_ref,
                      out_ref):
    S = sem_ref.shape[-1]

    sem = sem_ref[...]
    emb = emb_ref[...]

    # Fused sem-side gate pre-activations: (tm, 3S) = [pre_r_s | pre_u_s | rt]
    # (gate biases br|bu|brt are packed into bg).
    g_sem = (jnp.dot(sem, wg_s_ref[...], preferred_element_type=jnp.float32)
             + bg_ref[...])
    # emb contributes only to reset/update: (tm, 2S) = [pre_r_e | pre_u_e]
    g_emb = jnp.dot(emb, wg_e_ref[...], preferred_element_type=jnp.float32)

    # sigmoid(x) = 0.5 * (tanh(0.5 * x) + 1): single tanh push over the
    # contiguous 2S reset|update lanes instead of two exp+divide sigmoids.
    ru = 0.5 * (jnp.tanh(0.5 * (g_sem[:, :2 * S] + g_emb)) + 1.0)
    reset = ru[:, :S]
    update = ru[:, S:]

    rt = g_sem[:, 2 * S:]          # reset_transfer(sem) = sem @ Wrt + brt
    gated = rt * reset

    # candidate: tanh(cat(emb, gated) @ Wh^T + bh) split into two matmuls
    pre_h = (jnp.dot(emb, wh_e_ref[...], preferred_element_type=jnp.float32)
             + jnp.dot(gated, wh_s_ref[...], preferred_element_type=jnp.float32)
             + bh_ref[...])
    h = jnp.tanh(pre_h)

    # (1 - update) * sem + update * h  ==  sem + update * (h - sem)
    out_ref[...] = (sem + update * (h - sem)).astype(out_ref.dtype)


def _pick_row_tile(n):
    """Aim for ~8 grid steps (>=3-4 per TensorCore on a 2-TC chip) while
    keeping tiles large enough to amortize the ~0.35 us per-step overhead.
    Cap at 2048 rows: double-buffered activation VMEM stays < 2 MB."""
    target = pl.cdiv(n, 8)
    tm = ((target + 7) // 8) * 8     # sublane-aligned
    return max(8, min(2048, tm))


def sem_update(sem, emb, packed_params, *, tm=None):
    """sem: [N, S], emb: [N, E] -> [N, S]."""
    N, S = sem.shape
    E = emb.shape[1]

    wg_s, wg_e, bg, wh_e, wh_s, bh = packed_params
    GS = wg_s.shape[1]   # 3 * S
    G2 = wg_e.shape[1]   # 2 * S

    if tm is None:
        tm = _pick_row_tile(N)
    tm = max(8, (tm // 8) * 8)

    grid = pl.cdiv(N, tm)   # partial final block handled by masked OOB stores

    full = lambda shape: pl.BlockSpec(shape, lambda i: (0, 0))

    out = pl.pallas_call(
        sem_update_kernel,
        out_shape=jax.ShapeDtypeStruct((N, S), sem.dtype),
        grid_spec=pltpu.PrefetchScalarGridSpec(
            num_scalar_prefetch=0,
            grid=(grid,),
            in_specs=[
                pl.BlockSpec((tm, S), lambda i: (i, 0)),   # sem tile
                pl.BlockSpec((tm, E), lambda i: (i, 0)),   # emb tile
                full((S, GS)),                             # [wr_s | wu_s | wrt]
                full((E, G2)),                             # [wr_e | wu_e]
                full((1, GS)),                             # [br | bu | brt]
                full((E, S)),                              # Wh (emb part)
                full((S, S)),                              # Wh (gated-sem part)
                full((1, S)),                              # bh
            ],
            out_specs=pl.BlockSpec((tm, S), lambda i: (i, 0)),
        ),
        compiler_params=pltpu.CompilerParams(
            dimension_semantics=("parallel",)),
    )(sem, emb, wg_s, wg_e, bg, wh_e, wh_s, bh)

    return out


def init_params(key, sem_dim, embedding_dim):
    """Deterministic init mimicking nn.Linear (uniform +/- 1/sqrt(fan_in)).

    Weights are stored transposed as (in_dim, out_dim); concat-layers are
    split into the slice that multiplies each concatenated operand.
    """
    ks = jax.random.split(key, 8)
    cat = sem_dim + embedding_dim

    def lin(k, in_dim, out_dim):
        kw, kb = jax.random.split(k)
        bound = 1.0 / (in_dim ** 0.5)
        w = jax.random.uniform(kw, (in_dim, out_dim), jnp.float32, -bound, bound)
        b = jax.random.uniform(kb, (1, out_dim), jnp.float32, -bound, bound)
        return w, b

    # reset_weight: Linear(sem+emb, sem), input cat(sem, emb)
    wr, br = lin(ks[0], cat, sem_dim)
    wr_s, wr_e = wr[:sem_dim], wr[sem_dim:]
    # update_weight: same input ordering cat(sem, emb)
    wu, bu = lin(ks[1], cat, sem_dim)
    wu_s, wu_e = wu[:sem_dim], wu[sem_dim:]
    # reset_transfer: Linear(sem, sem)
    wrt, brt = lin(ks[2], sem_dim, sem_dim)
    # update: Linear(sem+emb, sem), input cat(emb, gated_sem)
    wh, bh = lin(ks[3], cat, sem_dim)
    wh_e, wh_s = wh[:embedding_dim], wh[embedding_dim:]

    return (wr_s, wr_e, br, wu_s, wu_e, bu, wrt, brt, wh_e, wh_s, bh)


def pack_params(raw):
    """Pack gate projections along the output dim for the kernel.

    sem side carries all three outputs [reset | update | reset_transfer];
    emb side carries only [reset | update] (no dead zero block)."""
    (wr_s, wr_e, br, wu_s, wu_e, bu, wrt, brt, wh_e, wh_s, bh) = raw
    wg_s = jnp.concatenate([wr_s, wu_s, wrt], axis=1)   # (S, 3S)
    wg_e = jnp.concatenate([wr_e, wu_e], axis=1)        # (E, 2S)
    bg = jnp.concatenate([br, bu, brt], axis=1)          # (1, 3S)
    return (wg_s, wg_e, bg, wh_e, wh_s, bh)


def sem_update_ref(sem, emb, raw_params):
    """Pure-JAX reference mirroring the PyTorch forward (LN=False)."""
    (wr_s, wr_e, br, wu_s, wu_e, bu, wrt, brt, wh_e, wh_s, bh) = raw_params
    reset = jax.nn.sigmoid(sem @ wr_s + emb @ wr_e + br)
    update = jax.nn.sigmoid(sem @ wu_s + emb @ wu_e + bu)
    gated = (sem @ wrt + brt) * reset
    h = jnp.tanh(emb @ wh_e + gated @ wh_s + bh)
    return (1.0 - update) * sem + update * h


if __name__ == "__main__":
    # TODO(synk): LN=True branch (fresh untrained LayerNorm built on CUDA each
    # forward in the reference) is not reproduced; only LN=False is implemented.
    sem_dim, embedding_dim = 32, 48
    batch = 16

    key = jax.random.PRNGKey(0)
    k_sem, k_emb, k_par = jax.random.split(key, 3)

    sem = jax.random.normal(k_sem, (batch, sem_dim), jnp.float32)
    emb = jax.random.normal(k_emb, (batch, embedding_dim), jnp.float32)
    raw_params = init_params(k_par, sem_dim, embedding_dim)
    packed = pack_params(raw_params)

    out = sem_update(sem, emb, packed)
    out = jax.block_until_ready(out)

    ref = sem_update_ref(sem, emb, raw_params)
    assert out.shape == (batch, sem_dim)
    assert jnp.allclose(out, ref, atol=1e-5, rtol=1e-5)

    print("KERNEL_OK")
</pallas_src>

<mosaic_0001>
module attributes {stable_mosaic.version = 11 : i64} {
  func.func @sem_update_kernel(%arg0: i32, %arg1: memref<8x32xf32, #tpu.memory_space<vmem>>, %arg2: memref<8x48xf32, #tpu.memory_space<vmem>>, %arg3: memref<32x96xf32, #tpu.memory_space<vmem>>, %arg4: memref<48x64xf32, #tpu.memory_space<vmem>>, %arg5: memref<1x96xf32, #tpu.memory_space<vmem>>, %arg6: memref<48x32xf32, #tpu.memory_space<vmem>>, %arg7: memref<32x32xf32, #tpu.memory_space<vmem>>, %arg8: memref<1x32xf32, #tpu.memory_space<vmem>>, %arg9: memref<8x32xf32, #tpu.memory_space<vmem>>) attributes {dimension_semantics = [#tpu.dimension_semantics<parallel>], iteration_bounds = array<i64: 2>, scalar_prefetch = 0 : i64, scratch_operands = 0 : i64, tpu.core_type = #tpu.core_type<tc>, window_params = [{transform_indices = @transform_0, window_bounds = array<i64: 8, 32>}, {transform_indices = @transform_1, window_bounds = array<i64: 8, 48>}, {pipeline_mode = #tpu.pipeline_mode<synchronous>, transform_indices = @transform_2, window_bounds = array<i64: 32, 96>}, {pipeline_mode = #tpu.pipeline_mode<synchronous>, transform_indices = @transform_3, window_bounds = array<i64: 48, 64>}, {pipeline_mode = #tpu.pipeline_mode<synchronous>, transform_indices = @transform_4, window_bounds = array<i64: 1, 96>}, {pipeline_mode = #tpu.pipeline_mode<synchronous>, transform_indices = @transform_5, window_bounds = array<i64: 48, 32>}, {pipeline_mode = #tpu.pipeline_mode<synchronous>, transform_indices = @transform_6, window_bounds = array<i64: 32, 32>}, {pipeline_mode = #tpu.pipeline_mode<synchronous>, transform_indices = @transform_7, window_bounds = array<i64: 1, 32>}, {transform_indices = @transform_8, window_bounds = array<i64: 8, 32>}]} {
    %c0 = arith.constant 0 : index
    %c0_0 = arith.constant 0 : index
    %0 = vector.load %arg1[%c0, %c0_0] : memref<8x32xf32, #tpu.memory_space<vmem>>, vector<8x32xf32>
    %c0_1 = arith.constant 0 : index
    %c0_2 = arith.constant 0 : index
    %1 = vector.load %arg2[%c0_1, %c0_2] : memref<8x48xf32, #tpu.memory_space<vmem>>, vector<8x48xf32>
    %c0_3 = arith.constant 0 : index
    %c0_4 = arith.constant 0 : index
    %2 = vector.load %arg3[%c0_3, %c0_4] : memref<32x96xf32, #tpu.memory_space<vmem>>, vector<32x96xf32>
    %cst = arith.constant dense<0.000000e+00> : vector<8x96xf32>
    %3 = tpu.matmul %0, %2, %cst {dimension_numbers = #tpu.dot_dimension_numbers<[1], [0], [0], [1], [0, 0, 1, 1], [], []>} : vector<8x32xf32>, vector<32x96xf32>, vector<8x96xf32> -> vector<8x96xf32>
    %c0_5 = arith.constant 0 : index
    %c0_6 = arith.constant 0 : index
    %4 = vector.load %arg5[%c0_5, %c0_6] : memref<1x96xf32, #tpu.memory_space<vmem>>, vector<1x96xf32>
    %5 = vector.broadcast %4 : vector<1x96xf32> to vector<8x96xf32>
    %6 = arith.addf %3, %5 : vector<8x96xf32>
    %c0_7 = arith.constant 0 : index
    %c0_8 = arith.constant 0 : index
    %7 = vector.load %arg4[%c0_7, %c0_8] : memref<48x64xf32, #tpu.memory_space<vmem>>, vector<48x64xf32>
    %cst_9 = arith.constant dense<0.000000e+00> : vector<8x64xf32>
    %8 = tpu.matmul %1, %7, %cst_9 {dimension_numbers = #tpu.dot_dimension_numbers<[1], [0], [0], [1], [0, 0, 1, 1], [], []>} : vector<8x48xf32>, vector<48x64xf32>, vector<8x64xf32> -> vector<8x64xf32>
    %9 = vector.extract_strided_slice %6 {offsets = [0, 0], sizes = [8, 64], strides = [1, 1]} : vector<8x96xf32> to vector<8x64xf32>
    %10 = arith.addf %9, %8 : vector<8x64xf32>
    %cst_10 = arith.constant 5.000000e-01 : f32
    %11 = vector.broadcast %cst_10 : f32 to vector<8x64xf32>
    %12 = arith.mulf %11, %10 : vector<8x64xf32>
    %13 = math.tanh %12 : vector<8x64xf32>
    %cst_11 = arith.constant 1.000000e+00 : f32
    %14 = vector.broadcast %cst_11 : f32 to vector<8x64xf32>
    %15 = arith.addf %13, %14 : vector<8x64xf32>
    %cst_12 = arith.constant 5.000000e-01 : f32
    %16 = vector.broadcast %cst_12 : f32 to vector<8x64xf32>
    %17 = arith.mulf %16, %15 : vector<8x64xf32>
    %18 = vector.extract_strided_slice %17 {offsets = [0, 0], sizes = [8, 32], strides = [1, 1]} : vector<8x64xf32> to vector<8x32xf32>
    %19 = vector.extract_strided_slice %17 {offsets = [0, 32], sizes = [8, 32], strides = [1, 1]} : vector<8x64xf32> to vector<8x32xf32>
    %20 = vector.extract_strided_slice %6 {offsets = [0, 64], sizes = [8, 32], strides = [1, 1]} : vector<8x96xf32> to vector<8x32xf32>
    %21 = arith.mulf %20, %18 : vector<8x32xf32>
    %c0_13 = arith.constant 0 : index
    %c0_14 = arith.constant 0 : index
    %22 = vector.load %arg6[%c0_13, %c0_14] : memref<48x32xf32, #tpu.memory_space<vmem>>, vector<48x32xf32>
    %cst_15 = arith.constant dense<0.000000e+00> : vector<8x32xf32>
    %23 = tpu.matmul %1, %22, %cst_15 {dimension_numbers = #tpu.dot_dimension_numbers<[1], [0], [0], [1], [0, 0, 1, 1], [], []>} : vector<8x48xf32>, vector<48x32xf32>, vector<8x32xf32> -> vector<8x32xf32>
    %c0_16 = arith.constant 0 : index
    %c0_17 = arith.constant 0 : index
    %24 = vector.load %arg7[%c0_16, %c0_17] : memref<32x32xf32, #tpu.memory_space<vmem>>, vector<32x32xf32>
    %cst_18 = arith.constant dense<0.000000e+00> : vector<8x32xf32>
    %25 = tpu.matmul %21, %24, %cst_18 {dimension_numbers = #tpu.dot_dimension_numbers<[1], [0], [0], [1], [0, 0, 1, 1], [], []>} : vector<8x32xf32>, vector<32x32xf32>, vector<8x32xf32> -> vector<8x32xf32>
    %26 = arith.addf %23, %25 : vector<8x32xf32>
    %c0_19 = arith.constant 0 : index
    %c0_20 = arith.constant 0 : index
    %27 = vector.load %arg8[%c0_19, %c0_20] : memref<1x32xf32, #tpu.memory_space<vmem>>, vector<1x32xf32>
    %28 = vector.broadcast %27 : vector<1x32xf32> to vector<8x32xf32>
    %29 = arith.addf %26, %28 : vector<8x32xf32>
    %30 = math.tanh %29 : vector<8x32xf32>
    %31 = arith.subf %30, %0 : vector<8x32xf32>
    %32 = arith.mulf %19, %31 : vector<8x32xf32>
    %33 = arith.addf %0, %32 : vector<8x32xf32>
    %c0_21 = arith.constant 0 : index
    %c0_22 = arith.constant 0 : index
    %34 = vector.load %arg9[%c0_21, %c0_22] : memref<8x32xf32, #tpu.memory_space<vmem>>, vector<8x32xf32>
    tpu.vector_store %arg9[%c0_21, %c0_22], %33 {strides = array<i32>} : memref<8x32xf32, #tpu.memory_space<vmem>>, vector<8x32xf32>,
    return
  }
  func.func @transform_0(%arg0: i32) -> (i32, i32) {
    %c0_i32 = arith.constant 0 : i32
    %c0_i32_0 = arith.constant 0 : i32
    return %arg0, %c0_i32 : i32, i32
  }
  func.func @transform_1(%arg0: i32) -> (i32, i32) {
    %c0_i32 = arith.constant 0 : i32
    %c0_i32_0 = arith.constant 0 : i32
    return %arg0, %c0_i32 : i32, i32
  }
  func.func @transform_2(%arg0: i32) -> (i32, i32) {
    %c0_i32 = arith.constant 0 : i32
    %c0_i32_0 = arith.constant 0 : i32
    %c0_i32_1 = arith.constant 0 : i32
    return %c0_i32, %c0_i32_0 : i32, i32
  }
  func.func @transform_3(%arg0: i32) -> (i32, i32) {
    %c0_i32 = arith.constant 0 : i32
    %c0_i32_0 = arith.constant 0 : i32
    %c0_i32_1 = arith.constant 0 : i32
    return %c0_i32, %c0_i32_0 : i32, i32
  }
  func.func @transform_4(%arg0: i32) -> (i32, i32) {
    %c0_i32 = arith.constant 0 : i32
    %c0_i32_0 = arith.constant 0 : i32
    %c0_i32_1 = arith.constant 0 : i32
    return %c0_i32, %c0_i32_0 : i32, i32
  }
  func.func @transform_5(%arg0: i32) -> (i32, i32) {
    %c0_i32 = arith.constant 0 : i32
    %c0_i32_0 = arith.constant 0 : i32
    %c0_i32_1 = arith.constant 0 : i32
    return %c0_i32, %c0_i32_0 : i32, i32
  }
  func.func @transform_6(%arg0: i32) -> (i32, i32) {
    %c0_i32 = arith.constant 0 : i32
    %c0_i32_0 = arith.constant 0 : i32
    %c0_i32_1 = arith.constant 0 : i32
    return %c0_i32, %c0_i32_0 : i32, i32
  }
  func.func @transform_7(%arg0: i32) -> (i32, i32) {
    %c0_i32 = arith.constant 0 : i32
    %c0_i32_0 = arith.constant 0 : i32
    %c0_i32_1 = arith.constant 0 : i32
    return %c0_i32, %c0_i32_0 : i32, i32
  }
  func.func @transform_8(%arg0: i32) -> (i32, i32) {
    %c0_i32 = arith.constant 0 : i32
    %c0_i32_0 = arith.constant 0 : i32
    return %arg0, %c0_i32 : i32, i32
  }
}

</mosaic_0001>

<llo_original>
// kernel: tpu_custom_call.1
$region0: #{tpu_custom_call.1}
  #allocation0 [shape = 'u32[]', space=smem, size = 0x4, offset = 0x4, fixed_abs, tag = 'smem constant byte address 0x4 - core index']
  #allocation1 [shape = 'u32[144,128]{1,0:T(1,128)}', space=vmem, size = 0x12000, scoped, tag = 'internal scratch']
  %s0 = inlined_call_operand.hbm [shape: f32[16,32], index: 0, kind: input, shape index: {}]
  %s1 = inlined_call_operand.hbm [shape: f32[16,48], index: 1, kind: input, shape index: {}]
  %s2 = inlined_call_operand.vmem [shape: f32[32,96], index: 2, kind: input, shape index: {}]
  %s3 = inlined_call_operand.vmem [shape: f32[48,64], index: 3, kind: input, shape index: {}]
  %s4 = inlined_call_operand.vmem [shape: f32[1,96], index: 4, kind: input, shape index: {}]
  %s5 = inlined_call_operand.vmem [shape: f32[48,32], index: 5, kind: input, shape index: {}]
  %s6 = inlined_call_operand.hbm [shape: f32[32,32], index: 6, kind: input, shape index: {}]
  %s7 = inlined_call_operand.vmem [shape: f32[1,32], index: 7, kind: input, shape index: {}]
  %s8 = inlined_call_operand.hbm [shape: f32[16,32], index: 8, kind: output, shape index: {}]
  %s9 = sld [smem:[#allocation0]]
  $region77: #{tpu_custom_call.1} parent=0
    _
  %s11 = ssub.s32 1, %s9
  %s12 = scalar_select 0, %s11, %s9
  $region1: #{tpu_custom_call.1} parent=0
    #allocation2 [shape = 'u8[8192]{0}', space=vmem, size = 0x2000, scoped, tag = 'input window, operand 0']
    #allocation3 [shape = 's32[2]{0}', space=sflag, size = 0x8, scoped, tag = 'scoped memory for tpu_custom_call.1']
    #allocation4 [shape = 's32[2]{0}', space=sflag, size = 0x8, scoped, tag = 'scoped memory for tpu_custom_call.1']
    #allocation5 [shape = 'u8[8192]{0}', space=vmem, size = 0x2000, scoped, tag = 'input window, operand 1']
    #allocation6 [shape = 's32[2]{0}', space=sflag, size = 0x8, scoped, tag = 'scoped memory for tpu_custom_call.1']
    #allocation7 [shape = 'u8[16384]{0}', space=vmem, size = 0x4000, scoped, tag = 'input window, operand 6, single buffered']
    #allocation8 [shape = 'u8[8192]{0}', space=vmem, size = 0x2000, scoped, tag = 'output window, operand 0']
    %13 = vsyncpa [#allocation3], 0
    %s14 = scalar_lea.sflag [#allocation3], 1
    %15 = vsyncpa %s14, 0
    %16 = vsyncpa [#allocation6], 0
    %s17 = scalar_lea.sflag [#allocation6], 1
    %18 = vsyncpa %s17, 0
    %19 = vsyncpa [#allocation4], 0
    %s20 = scalar_lea.sflag [#allocation4], 1
    %21 = vsyncpa %s20, 0
    loop: start=0, step=1, limit=4
    $region2: #{tpu_custom_call.1} parent=1 // loop_pre_header
      _
    $region3: #{tpu_custom_call.1} parent=1 // loop_header
      %s23 = sphi 0, %s27
      %p24 = scmp.ge.s32.totalorder %s23, 4
      %s33 = sphi 0, %s35
      %s36 = sphi 0, %s33
      %s37 = sphi 0, %s36
      %s53 = sphi 0, %s37
      %s59 = sphi 0, %s61
      %s62 = sphi 0, %s59
      %s63 = sphi 0, %s62
      %s79 = sphi 0, %s63
      %s83 = sphi 0, %s83
      %s85 = sphi 0, %s83
      %s86 = sphi 0, %s85
      %s100 = sphi 0, %s86
      %s104 = sphi 0, %s104
      %s106 = sphi 0, %s104
      %s107 = sphi 0, %s106
      %s121 = sphi 0, %s107
      %s125 = sphi 0, %s125
      %s127 = sphi 0, %s125
      %s128 = sphi 0, %s127
      %s142 = sphi 0, %s128
      %s146 = sphi 0, %s146
      %s148 = sphi 0, %s146
      %s149 = sphi 0, %s148
      %s163 = sphi 0, %s149
      %s167 = sphi 0, %s167
      %s169 = sphi 0, %s167
      %s170 = sphi 0, %s169
      %s184 = sphi 0, %s170
      %s188 = sphi 0, %s188
      %s190 = sphi 0, %s188
      %s191 = sphi 0, %s190
      %s205 = sphi 0, %s191
      %s211 = sphi 0, %s213
      %s214 = sphi 0, %s211
      %s215 = sphi 0, %s214
      %s231 = sphi 0, %s215
    $region4: #{tpu_custom_call.1} parent=1 // loop_header_branch
      %26 = sbr.rel (%p24) target = $region8
    $region5: #{tpu_custom_call.1} parent=1 // loop_body
      %s28 = ssub.s32 %s23, 1
      %s29 = ssub.s32 %s23, 2
      %s30 = sadd.s32 %s23, 1
      %s31 = ssub.s32 %s23, %s30
      %p32 = scmp.eq.s32.totalorder %s31, 0
      %s34 = sadd.s32 %s33, 1
      %s35 = scalar_select %p32, %s33, %s34
      %p38 = pneg %p32
      %p39 = scmp.eq.s32.totalorder %s23, 1
      %p40 = por %p38, %p39
      %p41 = scmp.ne.s32.totalorder %s33, %s36
      %p42 = scmp.eq.s32.totalorder %s23, 0
      %p43 = por %p41, %p42
      %p44 = scmp.ne.s32.totalorder %s33, %s36
      %p45 = scmp.eq.s32.totalorder %s28, 1
      %p46 = por %p44, %p45
      %p47 = scmp.ne.s32.totalorder %s36, %s37
      %p48 = scmp.eq.s32.totalorder %s28, 0
      %p49 = por %p47, %p48
      %p50 = scmp.ne.s32.totalorder %s36, %s37
      %p51 = scmp.eq.s32.totalorder %s29, 1
      %p52 = por %p50, %p51
      %p54 = scmp.ne.s32.totalorder %s37, %s53
      %p55 = scmp.eq.s32.totalorder %s29, 0
      %p56 = por %p54, %p55
      %s57 = ssub.s32 %s23, %s30
      %p58 = scmp.eq.s32.totalorder %s57, 0
      %s60 = sadd.s32 %s59, 1
      %s61 = scalar_select %p58, %s59, %s60
      %p64 = pneg %p58
      %p65 = scmp.eq.s32.totalorder %s23, 1
      %p66 = por %p64, %p65
      %p67 = scmp.ne.s32.totalorder %s59, %s62
      %p68 = scmp.eq.s32.totalorder %s23, 0
      %p69 = por %p67, %p68
      %p70 = scmp.ne.s32.totalorder %s59, %s62
      %p71 = scmp.eq.s32.totalorder %s28, 1
      %p72 = por %p70, %p71
      %p73 = scmp.ne.s32.totalorder %s62, %s63
      %p74 = scmp.eq.s32.totalorder %s28, 0
      %p75 = por %p73, %p74
      %p76 = scmp.ne.s32.totalorder %s62, %s63
      %p77 = scmp.eq.s32.totalorder %s29, 1
      %p78 = por %p76, %p77
      %p80 = scmp.ne.s32.totalorder %s63, %s79
      %p81 = scmp.eq.s32.totalorder %s29, 0
      %p82 = por %p80, %p81
      %s84 = sadd.s32 %s83, 1
      %p87 = scmp.eq.s32.totalorder %s23, 1
      %p88 = scmp.ne.s32.totalorder %s83, %s85
      %p89 = scmp.eq.s32.totalorder %s23, 0
      %p90 = por %p88, %p89
      %p91 = scmp.ne.s32.totalorder %s83, %s85
      %p92 = scmp.eq.s32.totalorder %s28, 1
      %p93 = por %p91, %p92
      %p94 = scmp.ne.s32.totalorder %s85, %s86
      %p95 = scmp.eq.s32.totalorder %s28, 0
      %p96 = por %p94, %p95
      %p97 = scmp.ne.s32.totalorder %s85, %s86
      %p98 = scmp.eq.s32.totalorder %s29, 1
      %p99 = por %p97, %p98
      %p101 = scmp.ne.s32.totalorder %s86, %s100
      %p102 = scmp.eq.s32.totalorder %s29, 0
      %p103 = por %p101, %p102
      %s105 = sadd.s32 %s104, 1
      %p108 = scmp.eq.s32.totalorder %s23, 1
      %p109 = scmp.ne.s32.totalorder %s104, %s106
      %p110 = scmp.eq.s32.totalorder %s23, 0
      %p111 = por %p109, %p110
      %p112 = scmp.ne.s32.totalorder %s104, %s106
      %p113 = scmp.eq.s32.totalorder %s28, 1
      %p114 = por %p112, %p113
      %p115 = scmp.ne.s32.totalorder %s106, %s107
      %p116 = scmp.eq.s32.totalorder %s28, 0
      %p117 = por %p115, %p116
      %p118 = scmp.ne.s32.totalorder %s106, %s107
      %p119 = scmp.eq.s32.totalorder %s29, 1
      %p120 = por %p118, %p119
      %p122 = scmp.ne.s32.totalorder %s107, %s121
      %p123 = scmp.eq.s32.totalorder %s29, 0
      %p124 = por %p122, %p123
      %s126 = sadd.s32 %s125, 1
      %p129 = scmp.eq.s32.totalorder %s23, 1
      %p130 = scmp.ne.s32.totalorder %s125, %s127
      %p131 = scmp.eq.s32.totalorder %s23, 0
      %p132 = por %p130, %p131
      %p133 = scmp.ne.s32.totalorder %s125, %s127
      %p134 = scmp.eq.s32.totalorder %s28, 1
      %p135 = por %p133, %p134
      %p136 = scmp.ne.s32.totalorder %s127, %s128
      %p137 = scmp.eq.s32.totalorder %s28, 0
      %p138 = por %p136, %p137
      %p139 = scmp.ne.s32.totalorder %s127, %s128
      %p140 = scmp.eq.s32.totalorder %s29, 1
      %p141 = por %p139, %p140
      %p143 = scmp.ne.s32.totalorder %s128, %s142
      %p144 = scmp.eq.s32.totalorder %s29, 0
      %p145 = por %p143, %p144
      %s147 = sadd.s32 %s146, 1
      %p150 = scmp.eq.s32.totalorder %s23, 1
      %p151 = scmp.ne.s32.totalorder %s146, %s148
      %p152 = scmp.eq.s32.totalorder %s23, 0
      %p153 = por %p151, %p152
      %p154 = scmp.ne.s32.totalorder %s146, %s148
      %p155 = scmp.eq.s32.totalorder %s28, 1
      %p156 = por %p154, %p155
      %p157 = scmp.ne.s32.totalorder %s148, %s149
      %p158 = scmp.eq.s32.totalorder %s28, 0
      %p159 = por %p157, %p158
      %p160 = scmp.ne.s32.totalorder %s148, %s149
      %p161 = scmp.eq.s32.totalorder %s29, 1
      %p162 = por %p160, %p161
      %p164 = scmp.ne.s32.totalorder %s149, %s163
      %p165 = scmp.eq.s32.totalorder %s29, 0
      %p166 = por %p164, %p165
      %s168 = sadd.s32 %s167, 1
      %p171 = scmp.eq.s32.totalorder %s23, 1
      %p172 = scmp.ne.s32.totalorder %s167, %s169
      %p173 = scmp.eq.s32.totalorder %s23, 0
      %p174 = por %p172, %p173
      %p175 = scmp.ne.s32.totalorder %s167, %s169
      %p176 = scmp.eq.s32.totalorder %s28, 1
      %p177 = por %p175, %p176
      %p178 = scmp.ne.s32.totalorder %s169, %s170
      %p179 = scmp.eq.s32.totalorder %s28, 0
      %p180 = por %p178, %p179
      %p181 = scmp.ne.s32.totalorder %s169, %s170
      %p182 = scmp.eq.s32.totalorder %s29, 1
      %p183 = por %p181, %p182
      %p185 = scmp.ne.s32.totalorder %s170, %s184
      %p186 = scmp.eq.s32.totalorder %s29, 0
      %p187 = por %p185, %p186
      %s189 = sadd.s32 %s188, 1
      %p192 = scmp.eq.s32.totalorder %s23, 1
      %p193 = scmp.ne.s32.totalorder %s188, %s190
      %p194 = scmp.eq.s32.totalorder %s23, 0
      %p195 = por %p193, %p194
      %p196 = scmp.ne.s32.totalorder %s188, %s190
      %p197 = scmp.eq.s32.totalorder %s28, 1
      %p198 = por %p196, %p197
      %p199 = scmp.ne.s32.totalorder %s190, %s191
      %p200 = scmp.eq.s32.totalorder %s28, 0
      %p201 = por %p199, %p200
      %p202 = scmp.ne.s32.totalorder %s190, %s191
      %p203 = scmp.eq.s32.totalorder %s29, 1
      %p204 = por %p202, %p203
      %p206 = scmp.ne.s32.totalorder %s191, %s205
      %p207 = scmp.eq.s32.totalorder %s29, 0
      %p208 = por %p206, %p207
      %s209 = ssub.s32 %s23, %s30
      %p210 = scmp.eq.s32.totalorder %s209, 0
      %s212 = sadd.s32 %s211, 1
      %s213 = scalar_select %p210, %s211, %s212
      %p216 = pneg %p210
      %p217 = scmp.eq.s32.totalorder %s23, 1
      %p218 = por %p216, %p217
      %p219 = scmp.ne.s32.totalorder %s211, %s214
      %p220 = scmp.eq.s32.totalorder %s23, 0
      %p221 = por %p219, %p220
      %p222 = scmp.ne.s32.totalorder %s211, %s214
      %p223 = scmp.eq.s32.totalorder %s28, 1
      %p224 = por %p222, %p223
      %p225 = scmp.ne.s32.totalorder %s214, %s215
      %p226 = scmp.eq.s32.totalorder %s28, 0
      %p227 = por %p225, %p226
      %p228 = scmp.ne.s32.totalorder %s214, %s215
      %p229 = scmp.eq.s32.totalorder %s29, 1
      %p230 = por %p228, %p229
      %p232 = scmp.ne.s32.totalorder %s215, %s231
      %p233 = scmp.eq.s32.totalorder %s29, 0
      %p234 = por %p232, %p233
      %p235 = scmp.le.s32.totalorder 1, %s23
      %p236 = scmp.lt.s32.totalorder %s23, 3
      %p237 = pnand %p235, %p236
      %p238 = pneg %p237
      // Predicated region
      $region9: #{tpu_custom_call.1} parent=5 // pred_check
        _
      $region10: #{tpu_custom_call.1} parent=5 // pred_check_branch
        %240 = sbr.rel (%p237) target = $region12
      $region11: #{tpu_custom_call.1} parent=5 // pred_region
        %s241 = ssub.s32 %s23, 1
        // Predicated region
        $region13: #{tpu_custom_call.1} parent=11 // pred_check
          %p242 = pneg %p96
        $region14: #{tpu_custom_call.1} parent=11 // pred_check_branch
          %244 = sbr.rel (%p242) target = $region16
        $region15: #{tpu_custom_call.1} parent=11 // pred_region
          _
        $region16: #{tpu_custom_call.1} parent=11 // pred_fallthru
          _
        // Predicated region
        $region17: #{tpu_custom_call.1} parent=11 // pred_check
          %p245 = pneg %p117
        $region18: #{tpu_custom_call.1} parent=11 // pred_check_branch
          %247 = sbr.rel (%p245) target = $region20
        $region19: #{tpu_custom_call.1} parent=11 // pred_region
          _
        $region20: #{tpu_custom_call.1} parent=11 // pred_fallthru
          _
        // Predicated region
        $region21: #{tpu_custom_call.1} parent=11 // pred_check
          %p248 = pneg %p138
        $region22: #{tpu_custom_call.1} parent=11 // pred_check_branch
          %250 = sbr.rel (%p248) target = $region24
        $region23: #{tpu_custom_call.1} parent=11 // pred_region
          _
        $region24: #{tpu_custom_call.1} parent=11 // pred_fallthru
          _
        // Predicated region
        $region25: #{tpu_custom_call.1} parent=11 // pred_check
          %p251 = pneg %p159
        $region26: #{tpu_custom_call.1} parent=11 // pred_check_branch
          %253 = sbr.rel (%p251) target = $region28
        $region27: #{tpu_custom_call.1} parent=11 // pred_region
          _
        $region28: #{tpu_custom_call.1} parent=11 // pred_fallthru
          _
        // Predicated region
        $region29: #{tpu_custom_call.1} parent=11 // pred_check
          %p254 = pneg %p180
        $region30: #{tpu_custom_call.1} parent=11 // pred_check_branch
          %256 = sbr.rel (%p254) target = $region32
        $region31: #{tpu_custom_call.1} parent=11 // pred_region
          %s258 = ssub.s32 512, 512
          %259 = vsyncadd [#allocation6], %s258
          %s260 = sshll.u32 [#allocation7], 4
          %s261 = int_to_ptr.vmem [resolvable:$true] %s260
          %266 = dma.hbm_to_vmem [thread:$0]  %s6, 512, %s261, [#allocation6], 128, 128, 8
        $region32: #{tpu_custom_call.1} parent=11 // pred_fallthru
          _
        // Predicated region
        $region33: #{tpu_custom_call.1} parent=11 // pred_check
          %p267 = pneg %p201
        $region34: #{tpu_custom_call.1} parent=11 // pred_check_branch
          %269 = sbr.rel (%p267) target = $region36
        $region35: #{tpu_custom_call.1} parent=11 // pred_region
          _
        $region36: #{tpu_custom_call.1} parent=11 // pred_fallthru
          _
      $region12: #{tpu_custom_call.1} parent=5 // pred_fallthru
        _
      %p270 = scmp.lt.s32.totalorder %s23, 2
      // Predicated region
      $region37: #{tpu_custom_call.1} parent=5 // pred_check
        %p271 = pneg %p270
      $region38: #{tpu_custom_call.1} parent=5 // pred_check_branch
        %273 = sbr.rel (%p271) target = $region40
      $region39: #{tpu_custom_call.1} parent=5 // pred_region
        // Predicated region
        $region41: #{tpu_custom_call.1} parent=39 // pred_check
          %p274 = pneg %p43
        $region42: #{tpu_custom_call.1} parent=39 // pred_check_branch
          %276 = sbr.rel (%p274) target = $region44
        $region43: #{tpu_custom_call.1} parent=39 // pred_region
          %s277 = sand.u32 %s33, 1
          %s278 = scalar_lea.sflag [#allocation3], %s277
          %s279 = sand.u32 %s33, 1
          %s280 = smul.addr %s279, 8
          %s281 = scalar_lea.vmem [#allocation2], %s280
          %s283 = ssub.s32 128, 128
          %284 = vsyncadd %s278, %s283
          %s285 = smul.addr %s23, 128
          %s286 = scalar_lea.hbm %s0, %s285
          %s288 = sshll.u32 %s281, 4
          %s289 = int_to_ptr.vmem [resolvable:$true] %s288
          %291 = dma.hbm_to_vmem [thread:$0]  %s286, 128, %s289, %s278
        $region44: #{tpu_custom_call.1} parent=39 // pred_fallthru
          _
        // Predicated region
        $region45: #{tpu_custom_call.1} parent=39 // pred_check
          %p292 = pneg %p69
        $region46: #{tpu_custom_call.1} parent=39 // pred_check_branch
          %294 = sbr.rel (%p292) target = $region48
        $region47: #{tpu_custom_call.1} parent=39 // pred_region
          %s295 = sand.u32 %s23, 1
          %s296 = scalar_lea.sflag [#allocation6], %s295
          %s297 = sand.u32 %s59, 1
          %s298 = smul.addr %s297, 8
          %s299 = scalar_lea.vmem [#allocation5], %s298
          %s301 = ssub.s32 128, 128
          %302 = vsyncadd %s296, %s301
          %s303 = smul.addr %s23, 128
          %s304 = scalar_lea.hbm %s1, %s303
          %s306 = sshll.u32 %s299, 4
          %s307 = int_to_ptr.vmem [resolvable:$true] %s306
          %309 = dma.hbm_to_vmem [thread:$0]  %s304, 128, %s307, %s296
        $region48: #{tpu_custom_call.1} parent=39 // pred_fallthru
          _
      $region40: #{tpu_custom_call.1} parent=5 // pred_fallthru
        _
      %p310 = scmp.le.s32.totalorder 1, %s23
      %p311 = scmp.lt.s32.totalorder %s23, 3
      %p312 = pnand %p310, %p311
      %p313 = pneg %p312
      // Predicated region
      $region49: #{tpu_custom_call.1} parent=5 // pred_check
        _
      $region50: #{tpu_custom_call.1} parent=5 // pred_check_branch
        %315 = sbr.rel (%p312) target = $region52
      $region51: #{tpu_custom_call.1} parent=5 // pred_region
        %s316 = ssub.s32 %s23, 1
        %s317 = sand.u32 %s36, 1
        %s318 = scalar_lea.sflag [#allocation3], %s317
        %s319 = sand.u32 %s36, 1
        %s320 = smul.addr %s319, 8
        %s321 = scalar_lea.vmem [#allocation2], %s320
        // Predicated region
        $region53: #{tpu_custom_call.1} parent=51 // pred_check
          %p322 = pneg %p49
        $region54: #{tpu_custom_call.1} parent=51 // pred_check_branch
          %324 = sbr.rel (%p322) target = $region56
        $region55: #{tpu_custom_call.1} parent=51 // pred_region
          %325 = dma.done %s318, 128
        $region56: #{tpu_custom_call.1} parent=51 // pred_fallthru
          _
        %s326 = sand.u32 %s28, 1
        %s327 = scalar_lea.sflag [#allocation6], %s326
        %s328 = sand.u32 %s62, 1
        %s329 = smul.addr %s328, 8
        %s330 = scalar_lea.vmem [#allocation5], %s329
        // Predicated region
        $region57: #{tpu_custom_call.1} parent=51 // pred_check
          %p331 = pneg %p75
        $region58: #{tpu_custom_call.1} parent=51 // pred_check_branch
          %333 = sbr.rel (%p331) target = $region60
        $region59: #{tpu_custom_call.1} parent=51 // pred_region
          %334 = dma.done %s327, 128
        $region60: #{tpu_custom_call.1} parent=51 // pred_fallthru
          _
        // Predicated region
        $region61: #{tpu_custom_call.1} parent=51 // pred_check
          %p335 = pneg %p180
        $region62: #{tpu_custom_call.1} parent=51 // pred_check_branch
          %337 = sbr.rel (%p335) target = $region64
        $region63: #{tpu_custom_call.1} parent=51 // pred_region
          %338 = dma.done [#allocation6], 512
        $region64: #{tpu_custom_call.1} parent=51 // pred_fallthru
          _
        %s339 = sand.u32 %s36, 1
        %s340 = scalar_lea.sflag [#allocation3], %s339
        %s341 = sand.u32 %s36, 1
        %s342 = smul.addr %s341, 8
        %s343 = scalar_lea.vmem [#allocation2], %s342
        %p344 = pneg %p49
        %p345 = pneg %p46
        %s346 = sand.u32 %s28, 1
        %s347 = scalar_lea.sflag [#allocation6], %s346
        %s348 = sand.u32 %s62, 1
        %s349 = smul.addr %s348, 8
        %s350 = scalar_lea.vmem [#allocation5], %s349
        %p351 = pneg %p75
        %p352 = pneg %p72
        %p353 = pneg %p96
        %p354 = pneg %p93
        %p355 = pneg %p117
        %p356 = pneg %p114
        %p357 = pneg %p138
        %p358 = pneg %p135
        %p359 = pneg %p159
        %p360 = pneg %p156
        %p361 = pneg %p180
        %p362 = pneg %p177
        %p363 = pneg %p201
        %p364 = pneg %p198
        %p365 = pneg %p227
        %p366 = pneg %p224
        %s367 = sand.u32 %s214, 1
        %s368 = scalar_lea.sflag [#allocation4], %s367
        %s369 = sand.u32 %s214, 1
        %s370 = smul.addr %s369, 8
        %s371 = scalar_lea.vmem [#allocation8], %s370
        %v372 = vld [vmem:[%s321] sm:$0xff]
        %v373 = vld [vmem:[%s330] sm:$0xff]
        %v374 = vld [vmem:[%s2] sm:$0xff]
        %v375 = vld [vmem:[%s2 + $0x8] sm:$0xff]
        %v376 = vld [vmem:[%s2 + $0x10] sm:$0xff]
        %v377 = vld [vmem:[%s2 + $0x18] sm:$0xff]
        %v378 = vld [vmem:[%s4] sm:$0x1]
        %v380 = vlaneseq
        %v381 = vshrl.u32 %v380, 7
        %v382 = vsub.s32 0, %v381
        %v383 = vrot.slane %v378, %v382
        %vm385 = vcmask 261120
        %v387 = vsel %vm385, %v372, 0
        %389 = vmatprep.subr.mxu0 0.0
        %390 = vmatpush1.msra.mxu0 0.0
        %391 = vmatprep.subr.mxu0 0.0
        %392 = vmatpush1.msra.mxu0 0.0
        %393 = vmatprep.subr.mxu0 0.0
        %394 = vmatpush1.msra.mxu0 0.0
        %395 = vmatprep.subr.mxu0 0.0
        %396 = vmatpush1.msra.mxu0 0.0
        %397 = vmatprep.subr.mxu0 0.0
        %398 = vmatpush1.msra.mxu0 0.0
        %399 = vmatprep.subr.mxu0 0.0
        %400 = vmatpush1.msra.mxu0 0.0
        %401 = vmatprep.subr.mxu0 0.0
        %402 = vmatpush1.msra.mxu0 0.0
        %403 = vmatprep.subr.mxu0 0.0
        %404 = vmatpush1.msra.mxu0 0.0
        %405 = vmatprep.subr.mxu0 0.0
        %406 = vmatpush1.msra.mxu0 0.0
        %407 = vmatprep.subr.mxu0 0.0
        %408 = vmatpush1.msra.mxu0 0.0
        %409 = vmatprep.subr.mxu0 0.0
        %410 = vmatpush1.msra.mxu0 0.0
        %411 = vmatprep.subr.mxu0 0.0
        %412 = vmatpush1.msra.mxu0 0.0
        %413 = vmatprep.subr.mxu0 0.0
        %414 = vmatpush1.msra.mxu0 %v377
        %415 = vmatprep.subr.mxu0 0.0
        %416 = vmatpush1.msra.mxu0 %v376
        %417 = vmatprep.subr.mxu0 0.0
        %418 = vmatpush1.msra.mxu0 %v375
        %419 = vmatprep.subr.mxu0 0.0
        %420 = vmatpush1.msra.mxu0 %v374
        %421 = vmatprep.subr.mxu0 0.0
        %422 = vmatpush2.msra.mxu0 0.0
        %423 = vmatprep.subr.mxu0 0.0
        %424 = vmatpush2.msra.mxu0 0.0
        %425 = vmatprep.subr.mxu0 0.0
        %426 = vmatpush2.msra.mxu0 0.0
        %427 = vmatprep.subr.mxu0 0.0
        %428 = vmatpush2.msra.mxu0 0.0
        %429 = vmatprep.subr.mxu0 0.0
        %430 = vmatpush2.msra.mxu0 0.0
        %431 = vmatprep.subr.mxu0 0.0
        %432 = vmatpush2.msra.mxu0 0.0
        %433 = vmatprep.subr.mxu0 0.0
        %434 = vmatpush2.msra.mxu0 0.0
        %435 = vmatprep.subr.mxu0 0.0
        %436 = vmatpush2.msra.mxu0 0.0
        %437 = vmatprep.subr.mxu0 0.0
        %438 = vmatpush2.msra.mxu0 0.0
        %439 = vmatprep.subr.mxu0 0.0
        %440 = vmatpush2.msra.mxu0 0.0
        %441 = vmatprep.subr.mxu0 0.0
        %442 = vmatpush2.msra.mxu0 0.0
        %443 = vmatprep.subr.mxu0 0.0
        %444 = vmatpush2.msra.mxu0 0.0
        %445 = vmatprep.subr.mxu0 0.0
        %446 = vmatpush2.msra.mxu0 0.0
        %447 = vmatprep.subr.mxu0 0.0
        %448 = vmatpush2.msra.mxu0 0.0
        %449 = vmatprep.subr.mxu0 0.0
        %450 = vmatpush2.msra.mxu0 0.0
        %451 = vmatprep.subr.mxu0 0.0
        %452 = vmatpush2.msra.mxu0 0.0
        %453 = vmatprep.mubr.f32.mxu0 0.0
        %454 = vmatmul.mubr.f32.gmra.mxu0 %v387
        %v455 = vpop.f32.mrf.mxu0
        %v456 = vadd.f32 %v383, %v455
        %v457 = vpop.f32.mrf.mxu0
        %458 = vdwg.mxu0
        %v459 = vld [vmem:[%s3] sm:$0xff]
        %v460 = vld [vmem:[%s3 + $0x8] sm:$0xff]
        %v461 = vld [vmem:[%s3 + $0x10] sm:$0xff]
        %v462 = vld [vmem:[%s3 + $0x18] sm:$0xff]
        %v463 = vld [vmem:[%s3 + $0x20] sm:$0xff]
        %v464 = vld [vmem:[%s3 + $0x28] sm:$0xff]
        %vm465 = vcmask 392192
        %v467 = vsel %vm465, %v373, 0
        %469 = vmatprep.subr.mxu0 0.0
        %470 = vmatpush1.msra.mxu0 0.0
        %471 = vmatprep.subr.mxu0 0.0
        %472 = vmatpush1.msra.mxu0 0.0
        %473 = vmatprep.subr.mxu0 0.0
        %474 = vmatpush1.msra.mxu0 0.0
        %475 = vmatprep.subr.mxu0 0.0
        %476 = vmatpush1.msra.mxu0 0.0
        %477 = vmatprep.subr.mxu0 0.0
        %478 = vmatpush1.msra.mxu0 0.0
        %479 = vmatprep.subr.mxu0 0.0
        %480 = vmatpush1.msra.mxu0 0.0
        %481 = vmatprep.subr.mxu0 0.0
        %482 = vmatpush1.msra.mxu0 0.0
        %483 = vmatprep.subr.mxu0 0.0
        %484 = vmatpush1.msra.mxu0 0.0
        %485 = vmatprep.subr.mxu0 0.0
        %486 = vmatpush1.msra.mxu0 0.0
        %487 = vmatprep.subr.mxu0 0.0
        %488 = vmatpush1.msra.mxu0 0.0
        %489 = vmatprep.subr.mxu0 0.0
        %490 = vmatpush1.msra.mxu0 %v464
        %491 = vmatprep.subr.mxu0 0.0
        %492 = vmatpush1.msra.mxu0 %v463
        %493 = vmatprep.subr.mxu0 0.0
        %494 = vmatpush1.msra.mxu0 %v462
        %495 = vmatprep.subr.mxu0 0.0
        %496 = vmatpush1.msra.mxu0 %v461
        %497 = vmatprep.subr.mxu0 0.0
        %498 = vmatpush1.msra.mxu0 %v460
        %499 = vmatprep.subr.mxu0 0.0
        %500 = vmatpush1.msra.mxu0 %v459
        %501 = vmatprep.subr.mxu0 0.0
        %502 = vmatpush2.msra.mxu0 0.0
        %503 = vmatprep.subr.mxu0 0.0
        %504 = vmatpush2.msra.mxu0 0.0
        %505 = vmatprep.subr.mxu0 0.0
        %506 = vmatpush2.msra.mxu0 0.0
        %507 = vmatprep.subr.mxu0 0.0
        %508 = vmatpush2.msra.mxu0 0.0
        %509 = vmatprep.subr.mxu0 0.0
        %510 = vmatpush2.msra.mxu0 0.0
        %511 = vmatprep.subr.mxu0 0.0
        %512 = vmatpush2.msra.mxu0 0.0
        %513 = vmatprep.subr.mxu0 0.0
        %514 = vmatpush2.msra.mxu0 0.0
        %515 = vmatprep.subr.mxu0 0.0
        %516 = vmatpush2.msra.mxu0 0.0
        %517 = vmatprep.subr.mxu0 0.0
        %518 = vmatpush2.msra.mxu0 0.0
        %519 = vmatprep.subr.mxu0 0.0
        %520 = vmatpush2.msra.mxu0 0.0
        %521 = vmatprep.subr.mxu0 0.0
        %522 = vmatpush2.msra.mxu0 0.0
        %523 = vmatprep.subr.mxu0 0.0
        %524 = vmatpush2.msra.mxu0 0.0
        %525 = vmatprep.subr.mxu0 0.0
        %526 = vmatpush2.msra.mxu0 0.0
        %527 = vmatprep.subr.mxu0 0.0
        %528 = vmatpush2.msra.mxu0 0.0
        %529 = vmatprep.subr.mxu0 0.0
        %530 = vmatpush2.msra.mxu0 0.0
        %531 = vmatprep.subr.mxu0 0.0
        %532 = vmatpush2.msra.mxu0 0.0
        %533 = vmatprep.mubr.f32.mxu0 0.0
        %534 = vmatmul.mubr.f32.gmra.mxu0 %v467
        %v535 = vpop.f32.mrf.mxu0
        %v536 = vadd.f32 0.0, %v535
        %v537 = vpop.f32.mrf.mxu0
        %538 = vdwg.mxu0
        %v539 = vadd.f32 %v456, %v536
        %v540 = vmul.f32 %v539, 0.5
        %v541 = vtanh.pop %v540
        %v542 = vadd.f32 %v541, 1.0
        %v543 = vmul.f32 %v542, 0.5
        %545 = vrot.lane.b32.xlu0 %v543, 64
        %v546 = vpop.permute.xlu0 %545
        %v548 = vmul.f32 %v456, %v546
        %v549 = vld [vmem:[%s5] sm:$0xff]
        %v550 = vld [vmem:[%s5 + $0x8] sm:$0xff]
        %v551 = vld [vmem:[%s5 + $0x10] sm:$0xff]
        %v552 = vld [vmem:[%s5 + $0x18] sm:$0xff]
        %v553 = vld [vmem:[%s5 + $0x20] sm:$0xff]
        %v554 = vld [vmem:[%s5 + $0x28] sm:$0xff]
        %v555 = vld [vmem:[#allocation7] sm:$0xff]
        %v556 = vld [vmem:[#allocation7 + $0x8] sm:$0xff]
        %v557 = vld [vmem:[#allocation7 + $0x10] sm:$0xff]
        %v558 = vld [vmem:[#allocation7 + $0x18] sm:$0xff]
        %560 = vrot.lane.b32.xlu0 %v548, 64
        %v561 = vpop.permute.xlu0 %560
        %v562 = vsel %vm385, %v561, 0
        %564 = vmatprep.subr.mxu0 0.0
        %565 = vmatpush1.msra.mxu0 0.0
        %566 = vmatprep.subr.mxu0 0.0
        %567 = vmatpush1.msra.mxu0 0.0
        %568 = vmatprep.subr.mxu0 0.0
        %569 = vmatpush1.msra.mxu0 0.0
        %570 = vmatprep.subr.mxu0 0.0
        %571 = vmatpush1.msra.mxu0 0.0
        %572 = vmatprep.subr.mxu0 0.0
        %573 = vmatpush1.msra.mxu0 0.0
        %574 = vmatprep.subr.mxu0 0.0
        %575 = vmatpush1.msra.mxu0 0.0
        %576 = vmatprep.subr.mxu0 0.0
        %577 = vmatpush1.msra.mxu0 0.0
        %578 = vmatprep.subr.mxu0 0.0
        %579 = vmatpush1.msra.mxu0 0.0
        %580 = vmatprep.subr.mxu0 0.0
        %581 = vmatpush1.msra.mxu0 0.0
        %582 = vmatprep.subr.mxu0 0.0
        %583 = vmatpush1.msra.mxu0 0.0
        %584 = vmatprep.subr.mxu0 0.0
        %585 = vmatpush1.msra.mxu0 0.0
        %586 = vmatprep.subr.mxu0 0.0
        %587 = vmatpush1.msra.mxu0 0.0
        %588 = vmatprep.subr.mxu0 0.0
        %589 = vmatpush1.msra.mxu0 %v558
        %590 = vmatprep.subr.mxu0 0.0
        %591 = vmatpush1.msra.mxu0 %v557
        %592 = vmatprep.subr.mxu0 0.0
        %593 = vmatpush1.msra.mxu0 %v556
        %594 = vmatprep.subr.mxu0 0.0
        %595 = vmatpush1.msra.mxu0 %v555
        %596 = vmatprep.subr.mxu0 0.0
        %597 = vmatpush2.msra.mxu0 0.0
        %598 = vmatprep.subr.mxu0 0.0
        %599 = vmatpush2.msra.mxu0 0.0
        %600 = vmatprep.subr.mxu0 0.0
        %601 = vmatpush2.msra.mxu0 0.0
        %602 = vmatprep.subr.mxu0 0.0
        %603 = vmatpush2.msra.mxu0 0.0
        %604 = vmatprep.subr.mxu0 0.0
        %605 = vmatpush2.msra.mxu0 0.0
        %606 = vmatprep.subr.mxu0 0.0
        %607 = vmatpush2.msra.mxu0 0.0
        %608 = vmatprep.subr.mxu0 0.0
        %609 = vmatpush2.msra.mxu0 0.0
        %610 = vmatprep.subr.mxu0 0.0
        %611 = vmatpush2.msra.mxu0 0.0
        %612 = vmatprep.subr.mxu0 0.0
        %613 = vmatpush2.msra.mxu0 0.0
        %614 = vmatprep.subr.mxu0 0.0
        %615 = vmatpush2.msra.mxu0 0.0
        %616 = vmatprep.subr.mxu0 0.0
        %617 = vmatpush2.msra.mxu0 0.0
        %618 = vmatprep.subr.mxu0 0.0
        %619 = vmatpush2.msra.mxu0 0.0
        %620 = vmatprep.subr.mxu0 0.0
        %621 = vmatpush2.msra.mxu0 0.0
        %622 = vmatprep.subr.mxu0 0.0
        %623 = vmatpush2.msra.mxu0 0.0
        %624 = vmatprep.subr.mxu0 0.0
        %625 = vmatpush2.msra.mxu0 0.0
        %626 = vmatprep.subr.mxu0 0.0
        %627 = vmatpush2.msra.mxu0 0.0
        %628 = vmatprep.mubr.f32.mxu0 0.0
        %629 = vmatmul.mubr.f32.gmra.mxu0 %v562
        %v630 = vpop.f32.mrf.mxu0
        %v631 = vadd.f32 0.0, %v630
        %v632 = vpop.f32.mrf.mxu0
        %633 = vdwg.mxu0
        %634 = vmatprep.subr.mxu0 0.0
        %635 = vmatpush1.msra.mxu0 0.0
        %636 = vmatprep.subr.mxu0 0.0
        %637 = vmatpush1.msra.mxu0 0.0
        %638 = vmatprep.subr.mxu0 0.0
        %639 = vmatpush1.msra.mxu0 0.0
        %640 = vmatprep.subr.mxu0 0.0
        %641 = vmatpush1.msra.mxu0 0.0
        %642 = vmatprep.subr.mxu0 0.0
        %643 = vmatpush1.msra.mxu0 0.0
        %644 = vmatprep.subr.mxu0 0.0
        %645 = vmatpush1.msra.mxu0 0.0
        %646 = vmatprep.subr.mxu0 0.0
        %647 = vmatpush1.msra.mxu0 0.0
        %648 = vmatprep.subr.mxu0 0.0
        %649 = vmatpush1.msra.mxu0 0.0
        %650 = vmatprep.subr.mxu0 0.0
        %651 = vmatpush1.msra.mxu0 0.0
        %652 = vmatprep.subr.mxu0 0.0
        %653 = vmatpush1.msra.mxu0 0.0
        %654 = vmatprep.subr.mxu0 0.0
        %655 = vmatpush1.msra.mxu0 %v554
        %656 = vmatprep.subr.mxu0 0.0
        %657 = vmatpush1.msra.mxu0 %v553
        %658 = vmatprep.subr.mxu0 0.0
        %659 = vmatpush1.msra.mxu0 %v552
        %660 = vmatprep.subr.mxu0 0.0
        %661 = vmatpush1.msra.mxu0 %v551
        %662 = vmatprep.subr.mxu0 0.0
        %663 = vmatpush1.msra.mxu0 %v550
        %664 = vmatprep.subr.mxu0 0.0
        %665 = vmatpush1.msra.mxu0 %v549
        %666 = vmatprep.subr.mxu0 0.0
        %667 = vmatpush2.msra.mxu0 0.0
        %668 = vmatprep.subr.mxu0 0.0
        %669 = vmatpush2.msra.mxu0 0.0
        %670 = vmatprep.subr.mxu0 0.0
        %671 = vmatpush2.msra.mxu0 0.0
        %672 = vmatprep.subr.mxu0 0.0
        %673 = vmatpush2.msra.mxu0 0.0
        %674 = vmatprep.subr.mxu0 0.0
        %675 = vmatpush2.msra.mxu0 0.0
        %676 = vmatprep.subr.mxu0 0.0
        %677 = vmatpush2.msra.mxu0 0.0
        %678 = vmatprep.subr.mxu0 0.0
        %679 = vmatpush2.msra.mxu0 0.0
        %680 = vmatprep.subr.mxu0 0.0
        %681 = vmatpush2.msra.mxu0 0.0
        %682 = vmatprep.subr.mxu0 0.0
        %683 = vmatpush2.msra.mxu0 0.0
        %684 = vmatprep.subr.mxu0 0.0
        %685 = vmatpush2.msra.mxu0 0.0
        %686 = vmatprep.subr.mxu0 0.0
        %687 = vmatpush2.msra.mxu0 0.0
        %688 = vmatprep.subr.mxu0 0.0
        %689 = vmatpush2.msra.mxu0 0.0
        %690 = vmatprep.subr.mxu0 0.0
        %691 = vmatpush2.msra.mxu0 0.0
        %692 = vmatprep.subr.mxu0 0.0
        %693 = vmatpush2.msra.mxu0 0.0
        %694 = vmatprep.subr.mxu0 0.0
        %695 = vmatpush2.msra.mxu0 0.0
        %696 = vmatprep.subr.mxu0 0.0
        %697 = vmatpush2.msra.mxu0 0.0
        %698 = vmatprep.mubr.f32.mxu0 0.0
        %699 = vmatmul.mubr.f32.gmra.mxu0 %v467
        %v700 = vpop.f32.mrf.mxu0
        %v701 = vadd.f32 %v631, %v700
        %v702 = vpop.f32.mrf.mxu0
        %703 = vdwg.mxu0
        %v704 = vld [vmem:[%s7] sm:$0x1]
        %v706 = vlaneseq
        %v707 = vshrl.u32 %v706, 7
        %v708 = vsub.s32 0, %v707
        %v709 = vrot.slane %v704, %v708
        %v711 = vadd.f32 %v701, %v709
        %v712 = vtanh.pop %v711
        %v713 = vsub.f32 %v712, %v372
        %715 = vrot.lane.b32.xlu0 %v713, 32
        %v716 = vpop.permute.xlu0 %715
        %v718 = vmul.f32 %v543, %v716
        %720 = vrot.lane.b32.xlu0 %v718, 96
        %v721 = vpop.permute.xlu0 %720
        %v723 = vadd.f32 %v372, %v721
        %724 = vst.msk [vmem:[%s371] sm:$0xff] %vm385, %v723
        %s725 = sand.u32 %s214, 1
        %s726 = scalar_lea.sflag [#allocation4], %s725
        %s727 = sand.u32 %s214, 1
        %s728 = smul.addr %s727, 8
        %s729 = scalar_lea.vmem [#allocation8], %s728
        // Predicated region
        $region65: #{tpu_custom_call.1} parent=51 // pred_check
          %p730 = pneg %p224
        $region66: #{tpu_custom_call.1} parent=51 // pred_check_branch
          %732 = sbr.rel (%p730) target = $region68
        $region67: #{tpu_custom_call.1} parent=51 // pred_region
          %s734 = ssub.s32 128, 128
          %735 = vsyncadd %s726, %s734
          %s736 = smul.addr %s28, 128
          %s737 = scalar_lea.hbm %s8, %s736
          %s739 = sshll.u32 %s729, 4
          %s740 = int_to_ptr.vmem [resolvable:$true] %s739
          %742 = dma.vmem_to_hbm [thread:$0]  %s740, 128, %s737, %s726
        $region68: #{tpu_custom_call.1} parent=51 // pred_fallthru
          _
      $region52: #{tpu_custom_call.1} parent=5 // pred_fallthru
        _
      %p743 = scmp.le.s32.totalorder 2, %s23
      // Predicated region
      $region69: #{tpu_custom_call.1} parent=5 // pred_check
        %p744 = pneg %p743
      $region70: #{tpu_custom_call.1} parent=5 // pred_check_branch
        %746 = sbr.rel (%p744) target = $region72
      $region71: #{tpu_custom_call.1} parent=5 // pred_region
        %s747 = ssub.s32 %s23, 2
        // Predicated region
        $region73: #{tpu_custom_call.1} parent=71 // pred_check
          %p748 = pneg %p230
        $region74: #{tpu_custom_call.1} parent=71 // pred_check_branch
          %750 = sbr.rel (%p748) target = $region76
        $region75: #{tpu_custom_call.1} parent=71 // pred_region
          %s751 = sand.u32 %s215, 1
          %s752 = scalar_lea.sflag [#allocation4], %s751
          %s753 = sand.u32 %s215, 1
          %s754 = smul.addr %s753, 8
          %s755 = scalar_lea.vmem [#allocation8], %s754
          %756 = dma.done %s752, 128
        $region76: #{tpu_custom_call.1} parent=71 // pred_fallthru
          _
      $region72: #{tpu_custom_call.1} parent=5 // pred_fallthru
        _
    $region6: #{tpu_custom_call.1} parent=1 // loop_footer
      %s27 = sadd.s32 1, %s23
    $region7: #{tpu_custom_call.1} parent=1 // loop_footer_branch
      %22 = sbr.rel target = $region3
    $region8: #{tpu_custom_call.1} parent=1 // loop_exit
      _
    %757 = vsyncpa [#allocation3], 1
    %s758 = scalar_lea.sflag [#allocation3], 1
    %759 = vsyncpa %s758, 1
    %760 = vsyncpa [#allocation6], 1
    %s761 = scalar_lea.sflag [#allocation6], 1
    %762 = vsyncpa %s761, 1
    %763 = vsyncpa [#allocation4], 1
    %s764 = scalar_lea.sflag [#allocation4], 1
    %765 = vsyncpa %s764, 1

</llo_original>
